<compile_context>
chip_gen: v5e
topology: v5e:2x2
jax: 0.10.0
libtpu: 0.0.40
codegen_flags: <defaults>
</compile_context>

<pallas_src>
import jax
import jax.numpy as jnp
from jax.experimental import pallas as pl
from jax.experimental.pallas import tpu as pltpu


def _round_up(x: int, m: int) -> int:
    return ((x + m - 1) // m) * m


def _cdiv(a: int, b: int) -> int:
    return (a + b - 1) // b


def _vmem_capacity_bytes(default: int = 64 << 20) -> int:
    """Physical VMEM per TensorCore (128 MiB on v5e/v6e, 64 MiB on v7x)."""
    try:
        info = pltpu.get_tpu_info()
        return int(getattr(info, "vmem_capacity_bytes", default))
    except Exception:
        return default


def _make_sums_kernel(t_hw: int, n_hw_per_split: int, hw: int, need_mask: bool):
    """Build the reduction kernel (closure over static tiling params)."""

    def kernel(pred_ref, targ_ref, out_ref):
        j = pl.program_id(2)

        @pl.when(j == 0)
        def _():
            out_ref[...] = jnp.zeros_like(out_ref)

        # Upcast inside the kernel (bf16 inputs stream at half HBM bytes).
        p = pred_ref[...].astype(jnp.float32)
        t = targ_ref[...].astype(jnp.float32)

        if need_mask:
            # Global column of lane 0 of this block; mask lanes >= HW with a
            # *select* so unspecified edge data (possibly non-finite) is zeroed.
            col0 = (pl.program_id(0) * n_hw_per_split + j) * t_hw
            lane = jax.lax.broadcasted_iota(jnp.int32, p.shape, 1)
            valid = (col0 + lane) < hw
            p = jnp.where(valid, p, 0.0)
            t = jnp.where(valid, t, 0.0)

        d = p - t
        sq = d * d

        # Accumulate per-row sums directly into lanes 0..2 of the resident block.
        out_ref[:, 0:1] += jnp.sum(sq * t, axis=1, keepdims=True)
        out_ref[:, 1:2] += jnp.sum(sq, axis=1, keepdims=True)
        out_ref[:, 2:3] += jnp.sum(t, axis=1, keepdims=True)

    return kernel


def ssloss_pallas(pred: jax.Array, target: jax.Array, smooth: float = 1.0) -> jax.Array:
    """SSLoss forward. pred/target: [N, C, H, W] (NCHW). Returns [N] float32."""
    N, C, H, W = pred.shape
    NC, HW = N * C, H * W

    # Free reshape of the contiguous NCHW layout (no transpose, no pad, no copy).
    pred_r = pred.reshape(NC, HW)
    targ_r = target.reshape(NC, HW)
    itemsize = pred.dtype.itemsize

    # --- lane (HW) tiling ----------------------------------------------------
    LANE_TILE_CAP = 16384                      # lanes per block (multiple of 128)
    hw128 = _round_up(HW, 128)
    n_hw_goal = _cdiv(hw128, LANE_TILE_CAP)
    t_hw = _round_up(_cdiv(HW, n_hw_goal), 128)
    n_hw = _cdiv(HW, t_hw)

    # --- row (NC) tiling, generation- and dtype-aware VMEM budget -------------
    vmem_cap = _vmem_capacity_bytes()
    live_cap = min(28 << 20, vmem_cap // 2)     # total live buffers target
    # 2 inputs x 2 pipeline buffers (native dtype) + double-buffered f32 accumulator.
    per_row_bytes = 4 * t_hw * itemsize + 2 * 128 * 4
    budget_rows = max(8, (live_cap // per_row_bytes) // 8 * 8)
    nc8 = _round_up(NC, 8)
    n_row = _cdiv(nc8, budget_rows)
    t_r = _round_up(_cdiv(nc8, n_row), 8)       # balanced row tiles, minimal tail
    n_row = _cdiv(NC, t_r)

    # Give the parallel row axis >= 2 tiles when rows allow (v7x's second core).
    if n_row < 2 and nc8 >= 16:
        t_r = _round_up(_cdiv(nc8, 2), 8)
        n_row = _cdiv(NC, t_r)

    # If rows can't be split (tiny NC), split the HW reduction across two
    # parallel slabs instead so v7x's second TensorCore isn't idle.
    n_split = 2 if (n_row < 2 and n_hw >= 2) else 1
    n_hw_per_split = _cdiv(n_hw, n_split)
    overshoot = n_split * n_hw_per_split != n_hw
    need_mask = (t_hw * n_hw != HW) or overshoot

    if overshoot:
        # Clamp the overflow hw-tile onto the last real tile; the in-kernel
        # mask (global column >= HW) zeroes its contribution exactly.
        in_map = lambda s, i, j: (i, jnp.minimum(s * n_hw_per_split + j, n_hw - 1))
    else:
        in_map = lambda s, i, j: (i, s * n_hw_per_split + j)

    grid = (n_split, n_row, n_hw_per_split)
    out_rows = n_row * t_r
    vmem_limit = int(min(live_cap + (12 << 20), vmem_cap * 3 // 4))

    sums = pl.pallas_call(
        _make_sums_kernel(t_hw, n_hw_per_split, HW, need_mask),
        out_shape=jax.ShapeDtypeStruct((out_rows, n_split * 128), jnp.float32),
        grid_spec=pltpu.PrefetchScalarGridSpec(
            num_scalar_prefetch=0,
            grid=grid,
            in_specs=[
                pl.BlockSpec((t_r, t_hw), in_map),
                pl.BlockSpec((t_r, t_hw), in_map),
            ],
            # Same output block across the HW axis -> resident VMEM accumulator;
            # each split writes its own 128-lane slab.
            out_specs=pl.BlockSpec((t_r, 128), lambda s, i, j: (i, s)),
        ),
        compiler_params=pltpu.CompilerParams(
            dimension_semantics=("parallel", "parallel", "arbitrary"),
            vmem_limit_bytes=vmem_limit,
        ),
    )(pred_r, targ_r)

    # --- tiny epilogue in plain JAX (N*C elements) -----------------------------
    sums = sums.reshape(out_rows, n_split, 128).sum(axis=1)
    ssqt = sums[:NC, 0]                          # sum((p-t)^2 * t)
    ssq = sums[:NC, 1]                           # sum((p-t)^2)
    st = sums[:NC, 2]                            # sum(t)
    s1 = ssqt / (smooth + st)
    s2 = (ssq - ssqt) / (smooth + jnp.float32(HW) - st)
    per_nc = 0.05 * s1 + 0.95 * s2               # (N*C,)
    return per_nc.reshape(N, C).mean(axis=1)     # mean over channels == sum / C


def ssloss_ref(pred: jax.Array, target: jax.Array) -> jax.Array:
    """Pure-JAX reference mirroring the PyTorch loop."""
    smooth = 1.0
    N, C, H, W = pred.shape
    loss = jnp.zeros((N,), jnp.float32)
    for i in range(C):
        p = pred[:, i].astype(jnp.float32)
        t = target[:, i].astype(jnp.float32)
        s1 = ((p - t) ** 2 * t).sum(axis=(1, 2)) / (smooth + t.sum(axis=(1, 2)))
        s2 = ((p - t) ** 2 * (1 - t)).sum(axis=(1, 2)) / (
            smooth + (1 - t).sum(axis=(1, 2))
        )
        loss = loss + 0.05 * s1 + 0.95 * s2
    return loss / C


if __name__ == "__main__":
    key = jax.random.PRNGKey(0)
    k1, k2 = jax.random.split(key)

    N, C, H, W = 2, 4, 16, 16
    pred = jax.random.uniform(k1, (N, C, H, W), dtype=jnp.float32)
    # target resembles a soft segmentation mask in [0, 1]
    target = jax.random.uniform(k2, (N, C, H, W), dtype=jnp.float32)

    out = jax.jit(ssloss_pallas)(pred, target)
    out = jax.block_until_ready(out)

    ref = ssloss_ref(pred, target)
    assert out.shape == (N,)
    assert jnp.allclose(out, ref, atol=1e-5, rtol=1e-4), (out, ref)

    print("KERNEL_OK")
</pallas_src>

<mosaic_0001>
module attributes {stable_mosaic.version = 11 : i64} {
  func.func @kernel(%arg0: i32, %arg1: i32, %arg2: i32, %arg3: memref<8x256xf32, #tpu.memory_space<vmem>>, %arg4: memref<8x256xf32, #tpu.memory_space<vmem>>, %arg5: memref<8x128xf32, #tpu.memory_space<vmem>>) attributes {dimension_semantics = [#tpu.dimension_semantics<parallel>, #tpu.dimension_semantics<parallel>, #tpu.dimension_semantics<arbitrary>], iteration_bounds = array<i64: 1, 1, 1>, scalar_prefetch = 0 : i64, scratch_operands = 0 : i64, tpu.core_type = #tpu.core_type<tc>, window_params = [{transform_indices = @transform_0, window_bounds = array<i64: 8, 256>}, {transform_indices = @transform_1, window_bounds = array<i64: 8, 256>}, {transform_indices = @transform_2, window_bounds = array<i64: 8, 128>}]} {
    %c0_i32 = arith.constant 0 : i32
    %0 = arith.cmpi eq, %arg2, %c0_i32 : i32
    %1 = arith.extui %0 : i1 to i32
    %c0_i32_0 = arith.constant 0 : i32
    %2 = arith.cmpi ne, %1, %c0_i32_0 : i32
    scf.if %2 {
      %cst_16 = arith.constant 0.000000e+00 : f32
      %23 = vector.broadcast %cst_16 : f32 to vector<8x128xf32>
      %c0_17 = arith.constant 0 : index
      %c0_18 = arith.constant 0 : index
      %24 = vector.load %arg5[%c0_17, %c0_18] : memref<8x128xf32, #tpu.memory_space<vmem>>, vector<8x128xf32>
      tpu.vector_store %arg5[%c0_17, %c0_18], %23 {strides = array<i32>} : memref<8x128xf32, #tpu.memory_space<vmem>>, vector<8x128xf32>,
    } else {
    }
    %c0 = arith.constant 0 : index
    %c0_1 = arith.constant 0 : index
    %3 = vector.load %arg3[%c0, %c0_1] : memref<8x256xf32, #tpu.memory_space<vmem>>, vector<8x256xf32>
    %c0_2 = arith.constant 0 : index
    %c0_3 = arith.constant 0 : index
    %4 = vector.load %arg4[%c0_2, %c0_3] : memref<8x256xf32, #tpu.memory_space<vmem>>, vector<8x256xf32>
    %5 = arith.subf %3, %4 : vector<8x256xf32>
    %6 = arith.mulf %5, %5 : vector<8x256xf32>
    %c0_4 = arith.constant 0 : index
    %c0_5 = arith.constant 0 : index
    %7 = vector.load %arg5[%c0_4, %c0_5] : memref<8x128xf32, #tpu.memory_space<vmem>>, vector<8x1xf32>
    %8 = arith.mulf %6, %4 : vector<8x256xf32>
    %cst = arith.constant dense<0.000000e+00> : vector<8xf32>
    %9 = vector.multi_reduction <add>, %8, %cst [1] : vector<8x256xf32> to vector<8xf32>
    %10 = vector.shape_cast %9 : vector<8xf32> to vector<8x1xf32>
    %11 = arith.addf %7, %10 : vector<8x1xf32>
    %c0_6 = arith.constant 0 : index
    %c0_7 = arith.constant 0 : index
    %12 = vector.load %arg5[%c0_6, %c0_7] : memref<8x128xf32, #tpu.memory_space<vmem>>, vector<8x1xf32>
    tpu.vector_store %arg5[%c0_6, %c0_7], %11 {strides = array<i32>} : memref<8x128xf32, #tpu.memory_space<vmem>>, vector<8x1xf32>,
    %c0_8 = arith.constant 0 : index
    %c1 = arith.constant 1 : index
    %13 = vector.load %arg5[%c0_8, %c1] : memref<8x128xf32, #tpu.memory_space<vmem>>, vector<8x1xf32>
    %cst_9 = arith.constant dense<0.000000e+00> : vector<8xf32>
    %14 = vector.multi_reduction <add>, %6, %cst_9 [1] : vector<8x256xf32> to vector<8xf32>
    %15 = vector.shape_cast %14 : vector<8xf32> to vector<8x1xf32>
    %16 = arith.addf %13, %15 : vector<8x1xf32>
    %c0_10 = arith.constant 0 : index
    %c1_11 = arith.constant 1 : index
    %17 = vector.load %arg5[%c0_10, %c1_11] : memref<8x128xf32, #tpu.memory_space<vmem>>, vector<8x1xf32>
    tpu.vector_store %arg5[%c0_10, %c1_11], %16 {strides = array<i32>} : memref<8x128xf32, #tpu.memory_space<vmem>>, vector<8x1xf32>,
    %c0_12 = arith.constant 0 : index
    %c2 = arith.constant 2 : index
    %18 = vector.load %arg5[%c0_12, %c2] : memref<8x128xf32, #tpu.memory_space<vmem>>, vector<8x1xf32>
    %cst_13 = arith.constant dense<0.000000e+00> : vector<8xf32>
    %19 = vector.multi_reduction <add>, %4, %cst_13 [1] : vector<8x256xf32> to vector<8xf32>
    %20 = vector.shape_cast %19 : vector<8xf32> to vector<8x1xf32>
    %21 = arith.addf %18, %20 : vector<8x1xf32>
    %c0_14 = arith.constant 0 : index
    %c2_15 = arith.constant 2 : index
    %22 = vector.load %arg5[%c0_14, %c2_15] : memref<8x128xf32, #tpu.memory_space<vmem>>, vector<8x1xf32>
    tpu.vector_store %arg5[%c0_14, %c2_15], %21 {strides = array<i32>} : memref<8x128xf32, #tpu.memory_space<vmem>>, vector<8x1xf32>,
    return
  }
  func.func @transform_0(%arg0: i32, %arg1: i32, %arg2: i32) -> (i32, i32) {
    %c1_i32 = arith.constant 1 : i32
    %0 = arith.muli %arg0, %c1_i32 : i32
    %1 = arith.addi %0, %arg2 : i32
    %c0_i32 = arith.constant 0 : i32
    return %arg1, %1 : i32, i32
  }
  func.func @transform_1(%arg0: i32, %arg1: i32, %arg2: i32) -> (i32, i32) {
    %c1_i32 = arith.constant 1 : i32
    %0 = arith.muli %arg0, %c1_i32 : i32
    %1 = arith.addi %0, %arg2 : i32
    %c0_i32 = arith.constant 0 : i32
    return %arg1, %1 : i32, i32
  }
  func.func @transform_2(%arg0: i32, %arg1: i32, %arg2: i32) -> (i32, i32) {
    %c0_i32 = arith.constant 0 : i32
    return %arg1, %arg0 : i32, i32
  }
}

</mosaic_0001>

<llo_original>
// kernel: ssloss_pallas.1
$region0: #{ssloss_pallas.1}
  #allocation0 [shape = 'u32[]', space=smem, size = 0x4, offset = 0x4, fixed_abs, tag = 'smem constant byte address 0x4 - core index']
  #allocation1 [shape = 'u32[72,128]{1,0:T(1,128)}', space=vmem, size = 0x9000, scoped, tag = 'internal scratch']
  %s0 = inlined_call_operand.vmem [shape: f32[8,256], index: 0, kind: input, shape index: {}]
  %s1 = inlined_call_operand.vmem [shape: f32[8,256], index: 1, kind: input, shape index: {}]
  %s2 = inlined_call_operand.vmem [shape: f32[8,128], index: 2, kind: output, shape index: {}]
  %s3 = sld [smem:[#allocation0]]
  $region22: #{ssloss_pallas.1} parent=0
    _
  %s5 = ssub.s32 1, %s3
  %s6 = scalar_select 0, %s5, %s3
  // Predicated region
  $region2: #{ssloss_pallas.1} parent=0 // pred_check
    _
  $region3: #{ssloss_pallas.1} parent=0 // pred_check_branch
    %8 = sbr.rel (0) target = $region5
  $region4: #{ssloss_pallas.1} parent=0 // pred_region
    %s9 = sadd.s32 0, 0
    %s10 = smul.u32 2, %s9
    %p11 = scmp.lt.s32.totalorder %s10, 1
    %s12 = scalar_select %p11, %s10, 1
    %s13 = smul.addr %s12, 8
    %s14 = scalar_lea.vmem %s0, %s13
    %s15 = sadd.s32 0, 0
    %s16 = smul.u32 2, %s15
  $region5: #{ssloss_pallas.1} parent=0 // pred_fallthru
    _
  // Predicated region
  $region6: #{ssloss_pallas.1} parent=0 // pred_check
    _
  $region7: #{ssloss_pallas.1} parent=0 // pred_check_branch
    %18 = sbr.rel (0) target = $region9
  $region8: #{ssloss_pallas.1} parent=0 // pred_region
    %s19 = sadd.s32 0, 0
    %s20 = smul.u32 2, %s19
    %p21 = scmp.lt.s32.totalorder %s20, 1
    %s22 = scalar_select %p21, %s20, 1
    %s23 = smul.addr %s22, 8
    %s24 = scalar_lea.vmem %s1, %s23
    %s25 = sadd.s32 0, 0
    %s26 = smul.u32 2, %s25
  $region9: #{ssloss_pallas.1} parent=0 // pred_fallthru
    _
  %s27 = sadd.s32 0, 0
  %s28 = smul.u32 2, %s27
  %p29 = scmp.lt.s32.totalorder %s28, 1
  %s30 = scalar_select %p29, %s28, 1
  %s31 = smul.addr %s30, 8
  %s32 = scalar_lea.vmem %s0, %s31
  %s33 = sadd.s32 0, 0
  %s34 = smul.u32 2, %s33
  %p35 = scmp.lt.s32.totalorder %s34, 1
  %s36 = scalar_select %p35, %s34, 1
  %s37 = smul.addr %s36, 8
  %s38 = scalar_lea.vmem %s1, %s37
  %s39 = sadd.s32 0, 0
  %s40 = smul.u32 2, %s39
  %p41 = scmp.lt.s32.totalorder %s40, 1
  %s42 = scalar_select %p41, %s40, 1
  %s43 = smul.addr %s42, 8
  %s44 = scalar_lea.vmem %s0, %s43
  %s45 = sadd.s32 0, 0
  %s46 = smul.u32 2, %s45
  %s47 = sadd.s32 0, 0
  %s48 = smul.u32 2, %s47
  %p49 = scmp.lt.s32.totalorder %s48, 1
  %s50 = scalar_select %p49, %s48, 1
  %s51 = smul.addr %s50, 8
  %s52 = scalar_lea.vmem %s1, %s51
  %s53 = sadd.s32 0, 0
  %s54 = smul.u32 2, %s53
  %p55 = scmp.eq.s32.totalorder 0, 0
  // Predicated region
  $region10: #{ssloss_pallas.1} parent=0 // pred_check
    %p56 = pneg %p55
  $region11: #{ssloss_pallas.1} parent=0 // pred_check_branch
    %58 = sbr.rel (%p56) target = $region13
  $region12: #{ssloss_pallas.1} parent=0 // pred_region
    %59 = vst [vmem:[%s2] sm:$0xff] 0.0
  $region13: #{ssloss_pallas.1} parent=0 // pred_fallthru
    _
  %v60 = vld [vmem:[%s44] sm:$0xff]
  %v61 = vld [vmem:[%s44 + $0x8] sm:$0xff]
  %v62 = vld [vmem:[%s52] sm:$0xff]
  %v63 = vld [vmem:[%s52 + $0x8] sm:$0xff]
  %v64 = vsub.f32 %v60, %v62
  %v65 = vsub.f32 %v61, %v63
  %v66 = vmul.f32 %v64, %v64
  %v67 = vmul.f32 %v65, %v65
  %v68 = vld [vmem:[%s2] sm:$0xff]
  %v69 = vmul.f32 %v66, %v62
  %v70 = vmul.f32 %v67, %v63
  %v71 = vadd.f32 %v69, %v70
  %72 = vadd.xlane.f32.xlu0 %v71
  %v73 = vpop.xlane.xlu0 %72
  %v74 = vadd.f32 %v68, %v73
  %vm75 = vcmask 7168
  %76 = vst.msk [vmem:[%s2] sm:$0xff] %vm75, %v74
  %v77 = vld [vmem:[%s2] sm:$0xff]
  %v78 = vadd.f32 %v66, %v67
  %79 = vadd.xlane.f32.xlu0 %v78
  %v80 = vpop.xlane.xlu0 %79
  %v81 = vadd.f32 %v77, %v80
  %vm82 = vcmask 15368
  %83 = vst.msk [vmem:[%s2] sm:$0xff] %vm82, %v81
  %v84 = vld [vmem:[%s2] sm:$0xff]
  %v85 = vadd.f32 %v62, %v63
  %86 = vadd.xlane.f32.xlu0 %v85
  %v87 = vpop.xlane.xlu0 %86
  %v88 = vadd.f32 %v84, %v87
  %vm89 = vcmask 23568
  %90 = vst.msk [vmem:[%s2] sm:$0xff] %vm89, %v88
  // Predicated region
  $region14: #{ssloss_pallas.1} parent=0 // pred_check
    _
  $region15: #{ssloss_pallas.1} parent=0 // pred_check_branch
    %92 = sbr.rel (0) target = $region17
  $region16: #{ssloss_pallas.1} parent=0 // pred_region
    _
  $region17: #{ssloss_pallas.1} parent=0 // pred_fallthru
    _
  // Predicated region
  $region18: #{ssloss_pallas.1} parent=0 // pred_check
    _
  $region19: #{ssloss_pallas.1} parent=0 // pred_check_branch
    %94 = sbr.rel (0) target = $region21
  $region20: #{ssloss_pallas.1} parent=0 // pred_region
    _
  $region21: #{ssloss_pallas.1} parent=0 // pred_fallthru
    _

</llo_original>
